<compile_context>
chip_gen: v5e
topology: v5e:2x2
jax: 0.10.0
libtpu: 0.0.40
codegen_flags: <defaults>
</compile_context>

<pallas_src>
import numpy as np
import jax
import jax.numpy as jnp
from jax import lax
from jax.experimental import pallas as pl
from jax.experimental.pallas import tpu as pltpu

NPAD = 128  # lane-dense padded output width for the final Linear


def derived_dims(cfg):
    H, FW, MW = cfg["window_size"], cfg["filter_width"], cfg["max1d_width"]
    H1R = H - FW + 1          # after conv1
    H1 = H1R - MW + 1         # after pool1  (= Output1_high)
    H2R = H1 - FW + 1         # after conv2
    H2 = H2R - MW + 1         # after pool2  (= Output2_high)
    return H1R, H1, H2R, H2


# --------------------------- one-time host-side prep -------------------------
def prepare_params(params, cfg):
    """Fold eval-mode BN into conv weights and build the structured matmul
    operands used by the fused kernel.  Call ONCE per parameter set."""
    H, W = cfg["window_size"], cfg["nb_channels"]
    CF, FC, NC = cfg["conv_filters"], cfg["fc_filters"], cfg["nb_classes"]
    FW = cfg["filter_width"]
    H1R, H1, H2R, H2 = derived_dims(cfg)
    WC = W * CF
    eps = 1e-5
    p = {k: np.asarray(v, np.float32) for k, v in params.items()}

    # Exact eval-mode BatchNorm fold into conv weights / bias.
    a1 = p["bn1_gamma"] / np.sqrt(p["bn1_var"] + eps)
    w1f = p["conv1_w"][:, 0, :, 0] * a1[:, None]                    # (CF, FW)
    b1f = a1 * (p["conv1_b"] - p["bn1_mean"]) + p["bn1_beta"]       # (CF,)
    a2 = p["bn2_gamma"] / np.sqrt(p["bn2_var"] + eps)
    w2f = p["conv2_w"][:, :, :, 0] * a2[:, None, None]              # (CF, CF, FW)
    b2f = a2 * (p["conv2_b"] - p["bn2_mean"]) + p["bn2_beta"]

    # conv1 as ONE matmul:  (B, H*W) @ M1 -> (B, H1R*W*CF), cols (h, w, cf).
    M1 = np.zeros((H * W, H1R * WC), np.float32)
    for k in range(FW):
        blk = np.kron(np.eye(W, dtype=np.float32), w1f[:, k][None, :])  # (W, WC)
        for ho in range(H1R):
            M1[(ho + k) * W:(ho + k + 1) * W, ho * WC:(ho + 1) * WC] = blk
    b1vec = np.tile(b1f, H1R * W)[None, :]                           # (1, H1R*WC)

    # conv2 as ONE matmul:  (B, H1*W*CF) @ M2 -> (B, H2R*W*CF), (h, w, c) layout.
    M2 = np.zeros((H1 * WC, H2R * WC), np.float32)
    for k in range(FW):
        blk = np.kron(np.eye(W, dtype=np.float32), w2f[:, :, k].T)      # (WC, WC)
        for ho in range(H2R):
            M2[(ho + k) * WC:(ho + k + 1) * WC, ho * WC:(ho + 1) * WC] = blk
    b2vec = np.tile(b2f, H2R * W)[None, :]                           # (1, H2R*WC)

    # fc1: permute rows from PyTorch flatten order (cf, h, w) to the kernel's
    # activation column order (h, w, cf); single K = H2*W*CF dot in-kernel.
    Wfc1 = (p["fc1_w"].reshape(FC, CF, H2, W)
            .transpose(2, 3, 1, 0).reshape(H2 * WC, FC))             # (H2*WC, FC)
    bfc1 = p["fc1_b"][None, :]                                       # (1, FC)

    # fc2: transpose + zero-pad N to 128 lanes (dense, unmasked store).
    Wfc2 = np.zeros((FC, NPAD), np.float32)
    Wfc2[:, :NC] = p["fc2_w"].T
    bfc2 = np.zeros((1, NPAD), np.float32)
    bfc2[0, :NC] = p["fc2_b"]

    host = dict(m1=M1, b1=b1vec, m2=M2, b2=b2vec,
                wfc1=Wfc1, bfc1=bfc1, wfc2=Wfc2, bfc2=bfc2)
    return {k: jnp.asarray(v) for k, v in host.items()}


# --------------------------------- kernel -----------------------------------
def _make_kernel(WC, MW, H1, H2):
    def kernel(x_ref, m1_ref, b1_ref, m2_ref, b2_ref,
               wfc1_ref, bfc1_ref, wfc2_ref, bfc2_ref, o_ref):
        f32 = jnp.float32
        # conv1 (+ folded BN) as a single banded matmul, then ReLU + maxpool.
        a1 = jnp.maximum(
            jnp.dot(x_ref[...], m1_ref[...], preferred_element_type=f32)
            + b1_ref[...], 0.0)
        p1 = a1[:, 0:H1 * WC]
        for j in range(1, MW):                       # stride-1 pool over h
            p1 = jnp.maximum(p1, a1[:, j * WC:(j + H1) * WC])
        # dropout: identity in eval mode.

        # conv2 (+ folded BN) as a single banded matmul, then ReLU + maxpool.
        a2 = jnp.maximum(
            jnp.dot(p1, m2_ref[...], preferred_element_type=f32)
            + b2_ref[...], 0.0)
        p2 = a2[:, 0:H2 * WC]
        for j in range(1, MW):
            p2 = jnp.maximum(p2, a2[:, j * WC:(j + H2) * WC])

        # fc1 (single K = H2*W*CF dot) + ReLU, then fc2 (lane-dense padded).
        hid = jnp.maximum(
            jnp.dot(p2, wfc1_ref[...], preferred_element_type=f32)
            + bfc1_ref[...], 0.0)
        out = jnp.dot(hid, wfc2_ref[...], preferred_element_type=f32) + bfc2_ref[...]
        o_ref[...] = out.astype(o_ref.dtype)

    return kernel


def cnn2d_c2f1_forward(x, prep, cfg):
    """Eval-mode forward of CNN2Dc2f1 as a single fused Pallas kernel.

    x: (B, window_size, nb_channels) float32; `prep` from prepare_params().
    """
    B = x.shape[0]
    H, W = cfg["window_size"], cfg["nb_channels"]
    CF, NC = cfg["conv_filters"], cfg["nb_classes"]
    MW = cfg["max1d_width"]
    _, H1, _, H2 = derived_dims(cfg)
    WC = W * CF

    # Batch tile: multiple of 8 (f32 sublanes).  256 rows fills the MXU M dim
    # on v6e/v7x, >=128 on v5e, and the per-step working set stays far below
    # every generation's scoped-VMEM default (incl. v7x's 64 MiB physical).
    TB = 256 if B >= 256 else ((B + 7) // 8) * 8
    Bp = ((B + TB - 1) // TB) * TB

    x2 = x.reshape(B, H * W).astype(jnp.float32)     # column index = h*W + w
    if Bp != B:
        x2 = jnp.pad(x2, ((0, Bp - B), (0, 0)))

    kernel = _make_kernel(WC, MW, H1, H2)

    def resident(arr):  # full-shape, grid-invariant -> fetched once, stays in VMEM
        return pl.BlockSpec(arr.shape, lambda i: (0, 0))

    out = pl.pallas_call(
        kernel,
        out_shape=jax.ShapeDtypeStruct((Bp, NPAD), jnp.float32),
        grid=(Bp // TB,),
        in_specs=[pl.BlockSpec((TB, H * W), lambda i: (i, 0)),
                  resident(prep["m1"]), resident(prep["b1"]),
                  resident(prep["m2"]), resident(prep["b2"]),
                  resident(prep["wfc1"]), resident(prep["bfc1"]),
                  resident(prep["wfc2"]), resident(prep["bfc2"])],
        out_specs=pl.BlockSpec((TB, NPAD), lambda i: (i, 0)),
        compiler_params=pltpu.CompilerParams(
            dimension_semantics=("parallel",)),
    )(x2, prep["m1"], prep["b1"], prep["m2"], prep["b2"],
      prep["wfc1"], prep["bfc1"], prep["wfc2"], prep["bfc2"])

    return out[:B, :NC]


# ----------------------------- reference & setup -----------------------------
def init_params(key, cfg):
    H, W = cfg["window_size"], cfg["nb_channels"]
    CF, FC, NC = cfg["conv_filters"], cfg["fc_filters"], cfg["nb_classes"]
    FW = cfg["filter_width"]
    _, _, _, H2 = derived_dims(cfg)
    D1 = H2 * CF * W
    ks = jax.random.split(key, 16)

    def u(k, shape, bound):
        return jax.random.uniform(k, shape, jnp.float32, -bound, bound)

    b1 = 1.0 / (1 * FW) ** 0.5
    b2 = 1.0 / (CF * FW) ** 0.5
    bf1 = 1.0 / D1 ** 0.5
    bf2 = 1.0 / FC ** 0.5
    return {
        "conv1_w": u(ks[0], (CF, 1, FW, 1), b1),
        "conv1_b": u(ks[1], (CF,), b1),
        "bn1_gamma": 1.0 + 0.1 * jax.random.normal(ks[2], (CF,), jnp.float32),
        "bn1_beta": 0.1 * jax.random.normal(ks[3], (CF,), jnp.float32),
        "bn1_mean": 0.1 * jax.random.normal(ks[4], (CF,), jnp.float32),
        "bn1_var": jax.random.uniform(ks[5], (CF,), jnp.float32, 0.5, 1.5),
        "conv2_w": u(ks[6], (CF, CF, FW, 1), b2),
        "conv2_b": u(ks[7], (CF,), b2),
        "bn2_gamma": 1.0 + 0.1 * jax.random.normal(ks[8], (CF,), jnp.float32),
        "bn2_beta": 0.1 * jax.random.normal(ks[9], (CF,), jnp.float32),
        "bn2_mean": 0.1 * jax.random.normal(ks[10], (CF,), jnp.float32),
        "bn2_var": jax.random.uniform(ks[11], (CF,), jnp.float32, 0.5, 1.5),
        "fc1_w": u(ks[12], (FC, D1), bf1),
        "fc1_b": u(ks[13], (FC,), bf1),
        "fc2_w": u(ks[14], (NC, FC), bf2),
        "fc2_b": u(ks[15], (NC,), bf2),
    }


def reference_forward(x, p, cfg):
    """Pure-JAX eval-mode reference identical to the PyTorch forward."""
    B = x.shape[0]
    H, W = cfg["window_size"], cfg["nb_channels"]
    MW = cfg["max1d_width"]
    eps = 1e-5
    hp = lax.Precision.HIGHEST

    def bn(y, g, b, m, v):
        sh = (1, -1, 1, 1)
        return (y - m.reshape(sh)) / jnp.sqrt(v.reshape(sh) + eps) * g.reshape(sh) + b.reshape(sh)

    y = x.reshape(B, 1, H, W)
    y = lax.conv_general_dilated(y, p["conv1_w"], (1, 1), "VALID",
                                 dimension_numbers=("NCHW", "OIHW", "NCHW"),
                                 precision=hp) + p["conv1_b"].reshape(1, -1, 1, 1)
    y = jnp.maximum(bn(y, p["bn1_gamma"], p["bn1_beta"], p["bn1_mean"], p["bn1_var"]), 0.0)
    y = lax.reduce_window(y, -jnp.inf, lax.max, (1, 1, MW, 1), (1, 1, 1, 1), "VALID")

    y = lax.conv_general_dilated(y, p["conv2_w"], (1, 1), "VALID",
                                 dimension_numbers=("NCHW", "OIHW", "NCHW"),
                                 precision=hp) + p["conv2_b"].reshape(1, -1, 1, 1)
    y = jnp.maximum(bn(y, p["bn2_gamma"], p["bn2_beta"], p["bn2_mean"], p["bn2_var"]), 0.0)
    y = lax.reduce_window(y, -jnp.inf, lax.max, (1, 1, MW, 1), (1, 1, 1, 1), "VALID")

    flat = y.reshape(B, -1)
    h = jnp.maximum(jnp.dot(flat, p["fc1_w"].T, precision=hp) + p["fc1_b"], 0.0)
    return jnp.dot(h, p["fc2_w"].T, precision=hp) + p["fc2_b"]


if __name__ == "__main__":
    cfg = dict(window_size=16, nb_channels=4, nb_classes=2, conv_filters=8,
               fc_filters=32, filter_width=3, max1d_width=2, drop_prob=0.5, seed=0)
    B = 2

    key = jax.random.PRNGKey(0)
    kx, kp = jax.random.split(key)
    params = init_params(kp, cfg)
    x = jax.random.normal(kx, (B, cfg["window_size"], cfg["nb_channels"]), jnp.float32)

    prep = prepare_params(params, cfg)      # one-time host-side preparation
    y = cnn2d_c2f1_forward(x, prep, cfg)
    y = jax.block_until_ready(y)

    y_ref = reference_forward(x, params, cfg)
    assert y.shape == (B, cfg["nb_classes"]), y.shape
    assert jnp.allclose(y, y_ref, atol=1e-3, rtol=1e-3), (y, y_ref)
    print("KERNEL_OK")
</pallas_src>

<mosaic_0001>
module attributes {stable_mosaic.version = 11 : i64} {
  func.func @kernel(%arg0: i32, %arg1: memref<8x64xf32, #tpu.memory_space<vmem>>, %arg2: memref<64x448xf32, #tpu.memory_space<vmem>>, %arg3: memref<1x448xf32, #tpu.memory_space<vmem>>, %arg4: memref<416x352xf32, #tpu.memory_space<vmem>>, %arg5: memref<1x352xf32, #tpu.memory_space<vmem>>, %arg6: memref<320x32xf32, #tpu.memory_space<vmem>>, %arg7: memref<1x32xf32, #tpu.memory_space<vmem>>, %arg8: memref<32x128xf32, #tpu.memory_space<vmem>>, %arg9: memref<1x128xf32, #tpu.memory_space<vmem>>, %arg10: memref<8x128xf32, #tpu.memory_space<vmem>>) attributes {dimension_semantics = [#tpu.dimension_semantics<parallel>], iteration_bounds = array<i64: 1>, scalar_prefetch = 0 : i64, scratch_operands = 0 : i64, tpu.core_type = #tpu.core_type<tc>, window_params = [{transform_indices = @transform_0, window_bounds = array<i64: 8, 64>}, {pipeline_mode = #tpu.pipeline_mode<synchronous>, transform_indices = @transform_1, window_bounds = array<i64: 64, 448>}, {pipeline_mode = #tpu.pipeline_mode<synchronous>, transform_indices = @transform_2, window_bounds = array<i64: 1, 448>}, {pipeline_mode = #tpu.pipeline_mode<synchronous>, transform_indices = @transform_3, window_bounds = array<i64: 416, 352>}, {pipeline_mode = #tpu.pipeline_mode<synchronous>, transform_indices = @transform_4, window_bounds = array<i64: 1, 352>}, {pipeline_mode = #tpu.pipeline_mode<synchronous>, transform_indices = @transform_5, window_bounds = array<i64: 320, 32>}, {pipeline_mode = #tpu.pipeline_mode<synchronous>, transform_indices = @transform_6, window_bounds = array<i64: 1, 32>}, {pipeline_mode = #tpu.pipeline_mode<synchronous>, transform_indices = @transform_7, window_bounds = array<i64: 32, 128>}, {pipeline_mode = #tpu.pipeline_mode<synchronous>, transform_indices = @transform_8, window_bounds = array<i64: 1, 128>}, {transform_indices = @transform_9, window_bounds = array<i64: 8, 128>}]} {
    %c0 = arith.constant 0 : index
    %c0_0 = arith.constant 0 : index
    %0 = vector.load %arg1[%c0, %c0_0] : memref<8x64xf32, #tpu.memory_space<vmem>>, vector<8x64xf32>
    %c0_1 = arith.constant 0 : index
    %c0_2 = arith.constant 0 : index
    %1 = vector.load %arg2[%c0_1, %c0_2] : memref<64x448xf32, #tpu.memory_space<vmem>>, vector<64x448xf32>
    %cst = arith.constant dense<0.000000e+00> : vector<8x448xf32>
    %2 = tpu.matmul %0, %1, %cst {dimension_numbers = #tpu.dot_dimension_numbers<[1], [0], [0], [1], [0, 0, 1, 1], [], []>} : vector<8x64xf32>, vector<64x448xf32>, vector<8x448xf32> -> vector<8x448xf32>
    %c0_3 = arith.constant 0 : index
    %c0_4 = arith.constant 0 : index
    %3 = vector.load %arg3[%c0_3, %c0_4] : memref<1x448xf32, #tpu.memory_space<vmem>>, vector<1x448xf32>
    %4 = vector.broadcast %3 : vector<1x448xf32> to vector<8x448xf32>
    %5 = arith.addf %2, %4 : vector<8x448xf32>
    %cst_5 = arith.constant 0.000000e+00 : f32
    %6 = vector.broadcast %cst_5 : f32 to vector<8x448xf32>
    %7 = arith.maximumf %5, %6 : vector<8x448xf32>
    %8 = vector.extract_strided_slice %7 {offsets = [0, 0], sizes = [8, 416], strides = [1, 1]} : vector<8x448xf32> to vector<8x416xf32>
    %9 = vector.extract_strided_slice %7 {offsets = [0, 32], sizes = [8, 416], strides = [1, 1]} : vector<8x448xf32> to vector<8x416xf32>
    %10 = arith.maximumf %8, %9 : vector<8x416xf32>
    %c0_6 = arith.constant 0 : index
    %c0_7 = arith.constant 0 : index
    %11 = vector.load %arg4[%c0_6, %c0_7] : memref<416x352xf32, #tpu.memory_space<vmem>>, vector<416x352xf32>
    %cst_8 = arith.constant dense<0.000000e+00> : vector<8x352xf32>
    %12 = tpu.matmul %10, %11, %cst_8 {dimension_numbers = #tpu.dot_dimension_numbers<[1], [0], [0], [1], [0, 0, 1, 1], [], []>} : vector<8x416xf32>, vector<416x352xf32>, vector<8x352xf32> -> vector<8x352xf32>
    %c0_9 = arith.constant 0 : index
    %c0_10 = arith.constant 0 : index
    %13 = vector.load %arg5[%c0_9, %c0_10] : memref<1x352xf32, #tpu.memory_space<vmem>>, vector<1x352xf32>
    %14 = vector.broadcast %13 : vector<1x352xf32> to vector<8x352xf32>
    %15 = arith.addf %12, %14 : vector<8x352xf32>
    %cst_11 = arith.constant 0.000000e+00 : f32
    %16 = vector.broadcast %cst_11 : f32 to vector<8x352xf32>
    %17 = arith.maximumf %15, %16 : vector<8x352xf32>
    %18 = vector.extract_strided_slice %17 {offsets = [0, 0], sizes = [8, 320], strides = [1, 1]} : vector<8x352xf32> to vector<8x320xf32>
    %19 = vector.extract_strided_slice %17 {offsets = [0, 32], sizes = [8, 320], strides = [1, 1]} : vector<8x352xf32> to vector<8x320xf32>
    %20 = arith.maximumf %18, %19 : vector<8x320xf32>
    %c0_12 = arith.constant 0 : index
    %c0_13 = arith.constant 0 : index
    %21 = vector.load %arg6[%c0_12, %c0_13] : memref<320x32xf32, #tpu.memory_space<vmem>>, vector<320x32xf32>
    %cst_14 = arith.constant dense<0.000000e+00> : vector<8x32xf32>
    %22 = tpu.matmul %20, %21, %cst_14 {dimension_numbers = #tpu.dot_dimension_numbers<[1], [0], [0], [1], [0, 0, 1, 1], [], []>} : vector<8x320xf32>, vector<320x32xf32>, vector<8x32xf32> -> vector<8x32xf32>
    %c0_15 = arith.constant 0 : index
    %c0_16 = arith.constant 0 : index
    %23 = vector.load %arg7[%c0_15, %c0_16] : memref<1x32xf32, #tpu.memory_space<vmem>>, vector<1x32xf32>
    %24 = vector.broadcast %23 : vector<1x32xf32> to vector<8x32xf32>
    %25 = arith.addf %22, %24 : vector<8x32xf32>
    %cst_17 = arith.constant 0.000000e+00 : f32
    %26 = vector.broadcast %cst_17 : f32 to vector<8x32xf32>
    %27 = arith.maximumf %25, %26 : vector<8x32xf32>
    %c0_18 = arith.constant 0 : index
    %c0_19 = arith.constant 0 : index
    %28 = vector.load %arg8[%c0_18, %c0_19] : memref<32x128xf32, #tpu.memory_space<vmem>>, vector<32x128xf32>
    %cst_20 = arith.constant dense<0.000000e+00> : vector<8x128xf32>
    %29 = tpu.matmul %27, %28, %cst_20 {dimension_numbers = #tpu.dot_dimension_numbers<[1], [0], [0], [1], [0, 0, 1, 1], [], []>} : vector<8x32xf32>, vector<32x128xf32>, vector<8x128xf32> -> vector<8x128xf32>
    %c0_21 = arith.constant 0 : index
    %c0_22 = arith.constant 0 : index
    %30 = vector.load %arg9[%c0_21, %c0_22] : memref<1x128xf32, #tpu.memory_space<vmem>>, vector<1x128xf32>
    %31 = vector.broadcast %30 : vector<1x128xf32> to vector<8x128xf32>
    %32 = arith.addf %29, %31 : vector<8x128xf32>
    %c0_23 = arith.constant 0 : index
    %c0_24 = arith.constant 0 : index
    %33 = vector.load %arg10[%c0_23, %c0_24] : memref<8x128xf32, #tpu.memory_space<vmem>>, vector<8x128xf32>
    tpu.vector_store %arg10[%c0_23, %c0_24], %32 {strides = array<i32>} : memref<8x128xf32, #tpu.memory_space<vmem>>, vector<8x128xf32>,
    return
  }
  func.func @transform_0(%arg0: i32) -> (i32, i32) {
    %c0_i32 = arith.constant 0 : i32
    %c0_i32_0 = arith.constant 0 : i32
    return %arg0, %c0_i32 : i32, i32
  }
  func.func @transform_1(%arg0: i32) -> (i32, i32) {
    %c0_i32 = arith.constant 0 : i32
    %c0_i32_0 = arith.constant 0 : i32
    %c0_i32_1 = arith.constant 0 : i32
    return %c0_i32, %c0_i32_0 : i32, i32
  }
  func.func @transform_2(%arg0: i32) -> (i32, i32) {
    %c0_i32 = arith.constant 0 : i32
    %c0_i32_0 = arith.constant 0 : i32
    %c0_i32_1 = arith.constant 0 : i32
    return %c0_i32, %c0_i32_0 : i32, i32
  }
  func.func @transform_3(%arg0: i32) -> (i32, i32) {
    %c0_i32 = arith.constant 0 : i32
    %c0_i32_0 = arith.constant 0 : i32
    %c0_i32_1 = arith.constant 0 : i32
    return %c0_i32, %c0_i32_0 : i32, i32
  }
  func.func @transform_4(%arg0: i32) -> (i32, i32) {
    %c0_i32 = arith.constant 0 : i32
    %c0_i32_0 = arith.constant 0 : i32
    %c0_i32_1 = arith.constant 0 : i32
    return %c0_i32, %c0_i32_0 : i32, i32
  }
  func.func @transform_5(%arg0: i32) -> (i32, i32) {
    %c0_i32 = arith.constant 0 : i32
    %c0_i32_0 = arith.constant 0 : i32
    %c0_i32_1 = arith.constant 0 : i32
    return %c0_i32, %c0_i32_0 : i32, i32
  }
  func.func @transform_6(%arg0: i32) -> (i32, i32) {
    %c0_i32 = arith.constant 0 : i32
    %c0_i32_0 = arith.constant 0 : i32
    %c0_i32_1 = arith.constant 0 : i32
    return %c0_i32, %c0_i32_0 : i32, i32
  }
  func.func @transform_7(%arg0: i32) -> (i32, i32) {
    %c0_i32 = arith.constant 0 : i32
    %c0_i32_0 = arith.constant 0 : i32
    %c0_i32_1 = arith.constant 0 : i32
    return %c0_i32, %c0_i32_0 : i32, i32
  }
  func.func @transform_8(%arg0: i32) -> (i32, i32) {
    %c0_i32 = arith.constant 0 : i32
    %c0_i32_0 = arith.constant 0 : i32
    %c0_i32_1 = arith.constant 0 : i32
    return %c0_i32, %c0_i32_0 : i32, i32
  }
  func.func @transform_9(%arg0: i32) -> (i32, i32) {
    %c0_i32 = arith.constant 0 : i32
    %c0_i32_0 = arith.constant 0 : i32
    return %arg0, %c0_i32 : i32, i32
  }
}

</mosaic_0001>

<llo_original>
// kernel: tpu_custom_call.1
$region0: #{tpu_custom_call.1}
  #allocation0 [shape = 'u32[]', space=smem, size = 0x4, offset = 0x4, fixed_abs, tag = 'smem constant byte address 0x4 - core index']
  #allocation1 [shape = 'u32[72,128]{1,0:T(1,128)}', space=vmem, size = 0x9000, scoped, tag = 'internal scratch']
  %s0 = inlined_call_operand.vmem [shape: f32[8,64], index: 0, kind: input, shape index: {}]
  %s1 = inlined_call_operand.vmem [shape: f32[64,448], index: 1, kind: input, shape index: {}]
  %s2 = inlined_call_operand.vmem [shape: f32[1,448], index: 2, kind: input, shape index: {}]
  %s3 = inlined_call_operand.hbm [shape: f32[416,352], index: 3, kind: input, shape index: {}]
  %s4 = inlined_call_operand.vmem [shape: f32[1,352], index: 4, kind: input, shape index: {}]
  %s5 = inlined_call_operand.vmem [shape: f32[320,32], index: 5, kind: input, shape index: {}]
  %s6 = inlined_call_operand.vmem [shape: f32[1,32], index: 6, kind: input, shape index: {}]
  %s7 = inlined_call_operand.vmem [shape: f32[32,128], index: 7, kind: input, shape index: {}]
  %s8 = inlined_call_operand.vmem [shape: f32[1,128], index: 8, kind: input, shape index: {}]
  %s9 = inlined_call_operand.hbm [shape: f32[8,128], index: 9, kind: output, shape index: {}]
  %s10 = sld [smem:[#allocation0]]
  $region50: #{tpu_custom_call.1} parent=0
    _
  %s12 = ssub.s32 1, %s10
  %s13 = scalar_select 0, %s12, %s10
  $region1: #{tpu_custom_call.1} parent=0
    #allocation2 [shape = 'u8[638976]{0}', space=vmem, size = 0x9c000, scoped, tag = 'input window, operand 3, single buffered']
    #allocation3 [shape = 's32[1]{0}', space=sflag, size = 0x4, scoped, tag = 'scoped memory for tpu_custom_call.1']
    #allocation4 [shape = 's32[1]{0}', space=sflag, size = 0x4, scoped, tag = 'scoped memory for tpu_custom_call.1']
    #allocation5 [shape = 'u8[4096]{0}', space=vmem, size = 0x1000, scoped, tag = 'output window, operand 0, single buffered']
    %14 = vsyncpa [#allocation3], 0
    %15 = vsyncpa [#allocation4], 0
    // Predicated region
    $region2: #{tpu_custom_call.1} parent=1 // pred_check
      _
    $region3: #{tpu_custom_call.1} parent=1 // pred_check_branch
      %17 = sbr.rel (0) target = $region5
    $region4: #{tpu_custom_call.1} parent=1 // pred_region
      _
    $region5: #{tpu_custom_call.1} parent=1 // pred_fallthru
      _
    // Predicated region
    $region6: #{tpu_custom_call.1} parent=1 // pred_check
      _
    $region7: #{tpu_custom_call.1} parent=1 // pred_check_branch
      %19 = sbr.rel (0) target = $region9
    $region8: #{tpu_custom_call.1} parent=1 // pred_region
      _
    $region9: #{tpu_custom_call.1} parent=1 // pred_fallthru
      _
    // Predicated region
    $region10: #{tpu_custom_call.1} parent=1 // pred_check
      _
    $region11: #{tpu_custom_call.1} parent=1 // pred_check_branch
      %21 = sbr.rel (0) target = $region13
    $region12: #{tpu_custom_call.1} parent=1 // pred_region
      _
    $region13: #{tpu_custom_call.1} parent=1 // pred_fallthru
      _
    // Predicated region
    $region14: #{tpu_custom_call.1} parent=1 // pred_check
      _
    $region15: #{tpu_custom_call.1} parent=1 // pred_check_branch
      %23 = sbr.rel (0) target = $region17
    $region16: #{tpu_custom_call.1} parent=1 // pred_region
      %25 = vsyncadd [#allocation3], 0
      %s26 = sshll.u32 %s3, 4
      %s27 = int_to_ptr.hbm [resolvable:$true] %s26
      %s28 = sshll.u32 [#allocation2], 4
      %s29 = int_to_ptr.vmem [resolvable:$true] %s28
      %34 = dma.hbm_to_vmem [thread:$0]  %s27, 19968, %s29, [#allocation3], 384, 384, 24
    $region17: #{tpu_custom_call.1} parent=1 // pred_fallthru
      _
    // Predicated region
    $region18: #{tpu_custom_call.1} parent=1 // pred_check
      _
    $region19: #{tpu_custom_call.1} parent=1 // pred_check_branch
      %36 = sbr.rel (0) target = $region21
    $region20: #{tpu_custom_call.1} parent=1 // pred_region
      _
    $region21: #{tpu_custom_call.1} parent=1 // pred_fallthru
      _
    // Predicated region
    $region22: #{tpu_custom_call.1} parent=1 // pred_check
      _
    $region23: #{tpu_custom_call.1} parent=1 // pred_check_branch
      %38 = sbr.rel (0) target = $region25
    $region24: #{tpu_custom_call.1} parent=1 // pred_region
      _
    $region25: #{tpu_custom_call.1} parent=1 // pred_fallthru
      _
    // Predicated region
    $region26: #{tpu_custom_call.1} parent=1 // pred_check
      _
    $region27: #{tpu_custom_call.1} parent=1 // pred_check_branch
      %40 = sbr.rel (0) target = $region29
    $region28: #{tpu_custom_call.1} parent=1 // pred_region
      _
    $region29: #{tpu_custom_call.1} parent=1 // pred_fallthru
      _
    // Predicated region
    $region30: #{tpu_custom_call.1} parent=1 // pred_check
      _
    $region31: #{tpu_custom_call.1} parent=1 // pred_check_branch
      %42 = sbr.rel (0) target = $region33
    $region32: #{tpu_custom_call.1} parent=1 // pred_region
      _
    $region33: #{tpu_custom_call.1} parent=1 // pred_fallthru
      _
    // Predicated region
    $region34: #{tpu_custom_call.1} parent=1 // pred_check
      _
    $region35: #{tpu_custom_call.1} parent=1 // pred_check_branch
      %44 = sbr.rel (0) target = $region37
    $region36: #{tpu_custom_call.1} parent=1 // pred_region
      _
    $region37: #{tpu_custom_call.1} parent=1 // pred_fallthru
      _
    // Predicated region
    $region38: #{tpu_custom_call.1} parent=1 // pred_check
      _
    $region39: #{tpu_custom_call.1} parent=1 // pred_check_branch
      %46 = sbr.rel (0) target = $region41
    $region40: #{tpu_custom_call.1} parent=1 // pred_region
      %48 = dma.done [#allocation3], 19968
    $region41: #{tpu_custom_call.1} parent=1 // pred_fallthru
      _
    %v49 = vld [vmem:[%s0] sm:$0xff]
    %v50 = vld [vmem:[%s1] sm:$0xff]
    %v51 = vld [vmem:[%s1 + $0x8] sm:$0xff]
    %v52 = vld [vmem:[%s1 + $0x10] sm:$0xff]
    %v53 = vld [vmem:[%s1 + $0x18] sm:$0xff]
    %v54 = vld [vmem:[%s1 + $0x20] sm:$0xff]
    %v55 = vld [vmem:[%s1 + $0x28] sm:$0xff]
    %v56 = vld [vmem:[%s1 + $0x30] sm:$0xff]
    %v57 = vld [vmem:[%s1 + $0x38] sm:$0xff]
    %v58 = vld [vmem:[%s1 + $0x40] sm:$0xff]
    %v59 = vld [vmem:[%s1 + $0x48] sm:$0xff]
    %v60 = vld [vmem:[%s1 + $0x50] sm:$0xff]
    %v61 = vld [vmem:[%s1 + $0x58] sm:$0xff]
    %v62 = vld [vmem:[%s1 + $0x60] sm:$0xff]
    %v63 = vld [vmem:[%s1 + $0x68] sm:$0xff]
    %v64 = vld [vmem:[%s1 + $0x70] sm:$0xff]
    %v65 = vld [vmem:[%s1 + $0x78] sm:$0xff]
    %v66 = vld [vmem:[%s1 + $0x80] sm:$0xff]
    %v67 = vld [vmem:[%s1 + $0x88] sm:$0xff]
    %v68 = vld [vmem:[%s1 + $0x90] sm:$0xff]
    %v69 = vld [vmem:[%s1 + $0x98] sm:$0xff]
    %v70 = vld [vmem:[%s1 + $0xa0] sm:$0xff]
    %v71 = vld [vmem:[%s1 + $0xa8] sm:$0xff]
    %v72 = vld [vmem:[%s1 + $0xb0] sm:$0xff]
    %v73 = vld [vmem:[%s1 + $0xb8] sm:$0xff]
    %v74 = vld [vmem:[%s1 + $0xc0] sm:$0xff]
    %v75 = vld [vmem:[%s1 + $0xc8] sm:$0xff]
    %v76 = vld [vmem:[%s1 + $0xd0] sm:$0xff]
    %v77 = vld [vmem:[%s1 + $0xd8] sm:$0xff]
    %v78 = vld [vmem:[%s1 + $0xe0] sm:$0xff]
    %v79 = vld [vmem:[%s1 + $0xe8] sm:$0xff]
    %v80 = vld [vmem:[%s1 + $0xf0] sm:$0xff]
    %v81 = vld [vmem:[%s1 + $0xf8] sm:$0xff]
    %v82 = vld [vmem:[%s2] sm:$0xf]
    %v84 = vperm.slane %v82, 0
    %v85 = vperm.slane %v82, 1
    %v86 = vperm.slane %v82, 2
    %v87 = vperm.slane %v82, 3
    %vm92 = vcmask 523264
    %v94 = vsel %vm92, %v49, 0
    %96 = vmatpush.msra.mxu0 0.0
    %97 = vmatpush.msra.mxu0 0.0
    %98 = vmatpush.msra.mxu0 0.0
    %99 = vmatpush.msra.mxu0 0.0
    %100 = vmatpush.msra.mxu0 0.0
    %101 = vmatpush.msra.mxu0 0.0
    %102 = vmatpush.msra.mxu0 0.0
    %103 = vmatpush.msra.mxu0 0.0
    %104 = vmatpush.msra.mxu0 %v78
    %105 = vmatpush.msra.mxu0 %v74
    %106 = vmatpush.msra.mxu0 %v70
    %107 = vmatpush.msra.mxu0 %v66
    %108 = vmatpush.msra.mxu0 %v62
    %109 = vmatpush.msra.mxu0 %v58
    %110 = vmatpush.msra.mxu0 %v54
    %111 = vmatpush.msra.mxu0 %v50
    %112 = vmatmul.f32.gmra.mxu0 %v94
    %v113 = vpop.f32.mrf.mxu0
    %v114 = vadd.f32 %v84, %v113
    %115 = vdwg.mxu0
    %116 = vmatpush.msra.mxu0 0.0
    %117 = vmatpush.msra.mxu0 0.0
    %118 = vmatpush.msra.mxu0 0.0
    %119 = vmatpush.msra.mxu0 0.0
    %120 = vmatpush.msra.mxu0 0.0
    %121 = vmatpush.msra.mxu0 0.0
    %122 = vmatpush.msra.mxu0 0.0
    %123 = vmatpush.msra.mxu0 0.0
    %124 = vmatpush.msra.mxu0 %v79
    %125 = vmatpush.msra.mxu0 %v75
    %126 = vmatpush.msra.mxu0 %v71
    %127 = vmatpush.msra.mxu0 %v67
    %128 = vmatpush.msra.mxu0 %v63
    %129 = vmatpush.msra.mxu0 %v59
    %130 = vmatpush.msra.mxu0 %v55
    %131 = vmatpush.msra.mxu0 %v51
    %132 = vmatmul.f32.gmra.mxu0 %v94
    %v133 = vpop.f32.mrf.mxu0
    %v134 = vadd.f32 %v85, %v133
    %135 = vdwg.mxu0
    %136 = vmatpush.msra.mxu0 0.0
    %137 = vmatpush.msra.mxu0 0.0
    %138 = vmatpush.msra.mxu0 0.0
    %139 = vmatpush.msra.mxu0 0.0
    %140 = vmatpush.msra.mxu0 0.0
    %141 = vmatpush.msra.mxu0 0.0
    %142 = vmatpush.msra.mxu0 0.0
    %143 = vmatpush.msra.mxu0 0.0
    %144 = vmatpush.msra.mxu0 %v80
    %145 = vmatpush.msra.mxu0 %v76
    %146 = vmatpush.msra.mxu0 %v72
    %147 = vmatpush.msra.mxu0 %v68
    %148 = vmatpush.msra.mxu0 %v64
    %149 = vmatpush.msra.mxu0 %v60
    %150 = vmatpush.msra.mxu0 %v56
    %151 = vmatpush.msra.mxu0 %v52
    %152 = vmatmul.f32.gmra.mxu0 %v94
    %v153 = vpop.f32.mrf.mxu0
    %v154 = vadd.f32 %v86, %v153
    %155 = vdwg.mxu0
    %156 = vmatpush.msra.mxu0 0.0
    %157 = vmatpush.msra.mxu0 0.0
    %158 = vmatpush.msra.mxu0 0.0
    %159 = vmatpush.msra.mxu0 0.0
    %160 = vmatpush.msra.mxu0 0.0
    %161 = vmatpush.msra.mxu0 0.0
    %162 = vmatpush.msra.mxu0 0.0
    %163 = vmatpush.msra.mxu0 0.0
    %164 = vmatpush.msra.mxu0 %v81
    %165 = vmatpush.msra.mxu0 %v77
    %166 = vmatpush.msra.mxu0 %v73
    %167 = vmatpush.msra.mxu0 %v69
    %168 = vmatpush.msra.mxu0 %v65
    %169 = vmatpush.msra.mxu0 %v61
    %170 = vmatpush.msra.mxu0 %v57
    %171 = vmatpush.msra.mxu0 %v53
    %172 = vmatmul.f32.gmra.mxu0 %v94
    %v173 = vpop.f32.mrf.mxu0
    %v174 = vadd.f32 %v87, %v173
    %175 = vdwg.mxu0
    %v176 = vmax.f32 %v114, 0.0
    %v177 = vmax.f32 %v134, 0.0
    %v178 = vmax.f32 %v154, 0.0
    %v179 = vmax.f32 %v174, 0.0
    %184 = vrot.lane.b32.xlu0 %v176, 96
    %v185 = vpop.permute.xlu0 %184
    %186 = vrot.lane.b32.xlu0 %v177, 96
    %v187 = vpop.permute.xlu0 %186
    %188 = vrot.lane.b32.xlu0 %v178, 96
    %v189 = vpop.permute.xlu0 %188
    %190 = vrot.lane.b32.xlu0 %v179, 96
    %v191 = vpop.permute.xlu0 %190
    %vm192 = vcmask 785408
    %v193 = vsel %vm192, %v185, %v187
    %v194 = vsel %vm192, %v187, %v189
    %v195 = vsel %vm192, %v189, %v191
    %v200 = vmax.f32 %v176, %v193
    %v201 = vmax.f32 %v177, %v194
    %v202 = vmax.f32 %v178, %v195
    %v203 = vmax.f32 %v179, %v191
    %v204 = vld [vmem:[#allocation2] sm:$0xff]
    %v205 = vld [vmem:[#allocation2 + $0x8] sm:$0xff]
    %v206 = vld [vmem:[#allocation2 + $0x10] sm:$0xff]
    %v207 = vld [vmem:[#allocation2 + $0x18] sm:$0xff]
    %v208 = vld [vmem:[#allocation2 + $0x20] sm:$0xff]
    %v209 = vld [vmem:[#allocation2 + $0x28] sm:$0xff]
    %v210 = vld [vmem:[#allocation2 + $0x30] sm:$0xff]
    %v211 = vld [vmem:[#allocation2 + $0x38] sm:$0xff]
    %v212 = vld [vmem:[#allocation2 + $0x40] sm:$0xff]
    %v213 = vld [vmem:[#allocation2 + $0x48] sm:$0xff]
    %v214 = vld [vmem:[#allocation2 + $0x50] sm:$0xff]
    %v215 = vld [vmem:[#allocation2 + $0x58] sm:$0xff]
    %v216 = vld [vmem:[#allocation2 + $0x60] sm:$0xff]
    %v217 = vld [vmem:[#allocation2 + $0x68] sm:$0xff]
    %v218 = vld [vmem:[#allocation2 + $0x70] sm:$0xff]
    %v219 = vld [vmem:[#allocation2 + $0x78] sm:$0xff]
    %v220 = vld [vmem:[#allocation2 + $0x80] sm:$0xff]
    %v221 = vld [vmem:[#allocation2 + $0x88] sm:$0xff]
    %v222 = vld [vmem:[#allocation2 + $0x90] sm:$0xff]
    %v223 = vld [vmem:[#allocation2 + $0x98] sm:$0xff]
    %v224 = vld [vmem:[#allocation2 + $0xa0] sm:$0xff]
    %v225 = vld [vmem:[#allocation2 + $0xa8] sm:$0xff]
    %v226 = vld [vmem:[#allocation2 + $0xb0] sm:$0xff]
    %v227 = vld [vmem:[#allocation2 + $0xb8] sm:$0xff]
    %v228 = vld [vmem:[#allocation2 + $0xc0] sm:$0xff]
    %v229 = vld [vmem:[#allocation2 + $0xc8] sm:$0xff]
    %v230 = vld [vmem:[#allocation2 + $0xd0] sm:$0xff]
    %v231 = vld [vmem:[#allocation2 + $0xd8] sm:$0xff]
    %v232 = vld [vmem:[#allocation2 + $0xe0] sm:$0xff]
    %v233 = vld [vmem:[#allocation2 + $0xe8] sm:$0xff]
    %v234 = vld [vmem:[#allocation2 + $0xf0] sm:$0xff]
    %v235 = vld [vmem:[#allocation2 + $0xf8] sm:$0xff]
    %v236 = vld [vmem:[#allocation2 + $0x100] sm:$0xff]
    %v237 = vld [vmem:[#allocation2 + $0x108] sm:$0xff]
    %v238 = vld [vmem:[#allocation2 + $0x110] sm:$0xff]
    %v239 = vld [vmem:[#allocation2 + $0x118] sm:$0xff]
    %v240 = vld [vmem:[#allocation2 + $0x120] sm:$0xff]
    %v241 = vld [vmem:[#allocation2 + $0x128] sm:$0xff]
    %v242 = vld [vmem:[#allocation2 + $0x130] sm:$0xff]
    %v243 = vld [vmem:[#allocation2 + $0x138] sm:$0xff]
    %v244 = vld [vmem:[#allocation2 + $0x140] sm:$0xff]
    %v245 = vld [vmem:[#allocation2 + $0x148] sm:$0xff]
    %v246 = vld [vmem:[#allocation2 + $0x150] sm:$0xff]
    %v247 = vld [vmem:[#allocation2 + $0x158] sm:$0xff]
    %v248 = vld [vmem:[#allocation2 + $0x160] sm:$0xff]
    %v249 = vld [vmem:[#allocation2 + $0x168] sm:$0xff]
    %v250 = vld [vmem:[#allocation2 + $0x170] sm:$0xff]
    %v251 = vld [vmem:[#allocation2 + $0x178] sm:$0xff]
    %v252 = vld [vmem:[#allocation2 + $0x180] sm:$0xff]
    %v253 = vld [vmem:[#allocation2 + $0x188] sm:$0xff]
    %v254 = vld [vmem:[#allocation2 + $0x190] sm:$0xff]
    %v255 = vld [vmem:[#allocation2 + $0x198] sm:$0xff]
    %v256 = vld [vmem:[#allocation2 + $0x1a0] sm:$0xff]
    %v257 = vld [vmem:[#allocation2 + $0x1a8] sm:$0xff]
    %v258 = vld [vmem:[#allocation2 + $0x1b0] sm:$0xff]
    %v259 = vld [vmem:[#allocation2 + $0x1b8] sm:$0xff]
    %v260 = vld [vmem:[#allocation2 + $0x1c0] sm:$0xff]
    %v261 = vld [vmem:[#allocation2 + $0x1c8] sm:$0xff]
    %v262 = vld [vmem:[#allocation2 + $0x1d0] sm:$0xff]
    %v263 = vld [vmem:[#allocation2 + $0x1d8] sm:$0xff]
    %v264 = vld [vmem:[#allocation2 + $0x1e0] sm:$0xff]
    %v265 = vld [vmem:[#allocation2 + $0x1e8] sm:$0xff]
    %v266 = vld [vmem:[#allocation2 + $0x1f0] sm:$0xff]
    %v267 = vld [vmem:[#allocation2 + $0x1f8] sm:$0xff]
    %v268 = vld [vmem:[#allocation2 + $0x200] sm:$0xff]
    %v269 = vld [vmem:[#allocation2 + $0x208] sm:$0xff]
    %v270 = vld [vmem:[#allocation2 + $0x210] sm:$0xff]
    %v271 = vld [vmem:[#allocation2 + $0x218] sm:$0xff]
    %v272 = vld [vmem:[#allocation2 + $0x220] sm:$0xff]
    %v273 = vld [vmem:[#allocation2 + $0x228] sm:$0xff]
    %v274 = vld [vmem:[#allocation2 + $0x230] sm:$0xff]
    %v275 = vld [vmem:[#allocation2 + $0x238] sm:$0xff]
    %v276 = vld [vmem:[#allocation2 + $0x240] sm:$0xff]
    %v277 = vld [vmem:[#allocation2 + $0x248] sm:$0xff]
    %v278 = vld [vmem:[#allocation2 + $0x250] sm:$0xff]
    %v279 = vld [vmem:[#allocation2 + $0x258] sm:$0xff]
    %v280 = vld [vmem:[#allocation2 + $0x260] sm:$0xff]
    %v281 = vld [vmem:[#allocation2 + $0x268] sm:$0xff]
    %v282 = vld [vmem:[#allocation2 + $0x270] sm:$0xff]
    %v283 = vld [vmem:[#allocation2 + $0x278] sm:$0xff]
    %v284 = vld [vmem:[#allocation2 + $0x280] sm:$0xff]
    %v285 = vld [vmem:[#allocation2 + $0x288] sm:$0xff]
    %v286 = vld [vmem:[#allocation2 + $0x290] sm:$0xff]
    %v287 = vld [vmem:[#allocation2 + $0x298] sm:$0xff]
    %v288 = vld [vmem:[#allocation2 + $0x2a0] sm:$0xff]
    %v289 = vld [vmem:[#allocation2 + $0x2a8] sm:$0xff]
    %v290 = vld [vmem:[#allocation2 + $0x2b0] sm:$0xff]
    %v291 = vld [vmem:[#allocation2 + $0x2b8] sm:$0xff]
    %v292 = vld [vmem:[#allocation2 + $0x2c0] sm:$0xff]
    %v293 = vld [vmem:[#allocation2 + $0x2c8] sm:$0xff]
    %v294 = vld [vmem:[#allocation2 + $0x2d0] sm:$0xff]
    %v295 = vld [vmem:[#allocation2 + $0x2d8] sm:$0xff]
    %v296 = vld [vmem:[#allocation2 + $0x2e0] sm:$0xff]
    %v297 = vld [vmem:[#allocation2 + $0x2e8] sm:$0xff]
    %v298 = vld [vmem:[#allocation2 + $0x2f0] sm:$0xff]
    %v299 = vld [vmem:[#allocation2 + $0x2f8] sm:$0xff]
    %v300 = vld [vmem:[#allocation2 + $0x300] sm:$0xff]
    %v301 = vld [vmem:[#allocation2 + $0x308] sm:$0xff]
    %v302 = vld [vmem:[#allocation2 + $0x310] sm:$0xff]
    %v303 = vld [vmem:[#allocation2 + $0x318] sm:$0xff]
    %v304 = vld [vmem:[#allocation2 + $0x320] sm:$0xff]
    %v305 = vld [vmem:[#allocation2 + $0x328] sm:$0xff]
    %v306 = vld [vmem:[#allocation2 + $0x330] sm:$0xff]
    %v307 = vld [vmem:[#allocation2 + $0x338] sm:$0xff]
    %v308 = vld [vmem:[#allocation2 + $0x340] sm:$0xff]
    %v309 = vld [vmem:[#allocation2 + $0x348] sm:$0xff]
    %v310 = vld [vmem:[#allocation2 + $0x350] sm:$0xff]
    %v311 = vld [vmem:[#allocation2 + $0x358] sm:$0xff]
    %v312 = vld [vmem:[#allocation2 + $0x360] sm:$0xff]
    %v313 = vld [vmem:[#allocation2 + $0x368] sm:$0xff]
    %v314 = vld [vmem:[#allocation2 + $0x370] sm:$0xff]
    %v315 = vld [vmem:[#allocation2 + $0x378] sm:$0xff]
    %v316 = vld [vmem:[#allocation2 + $0x380] sm:$0xff]
    %v317 = vld [vmem:[#allocation2 + $0x388] sm:$0xff]
    %v318 = vld [vmem:[#allocation2 + $0x390] sm:$0xff]
    %v319 = vld [vmem:[#allocation2 + $0x398] sm:$0xff]
    %v320 = vld [vmem:[#allocation2 + $0x3a0] sm:$0xff]
    %v321 = vld [vmem:[#allocation2 + $0x3a8] sm:$0xff]
    %v322 = vld [vmem:[#allocation2 + $0x3b0] sm:$0xff]
    %v323 = vld [vmem:[#allocation2 + $0x3b8] sm:$0xff]
    %v324 = vld [vmem:[#allocation2 + $0x3c0] sm:$0xff]
    %v325 = vld [vmem:[#allocation2 + $0x3c8] sm:$0xff]
    %v326 = vld [vmem:[#allocation2 + $0x3d0] sm:$0xff]
    %v327 = vld [vmem:[#allocation2 + $0x3d8] sm:$0xff]
    %v328 = vld [vmem:[#allocation2 + $0x3e0] sm:$0xff]
    %v329 = vld [vmem:[#allocation2 + $0x3e8] sm:$0xff]
    %v330 = vld [vmem:[#allocation2 + $0x3f0] sm:$0xff]
    %v331 = vld [vmem:[#allocation2 + $0x3f8] sm:$0xff]
    %v332 = vld [vmem:[#allocation2 + $0x400] sm:$0xff]
    %v333 = vld [vmem:[#allocation2 + $0x408] sm:$0xff]
    %v334 = vld [vmem:[#allocation2 + $0x410] sm:$0xff]
    %v335 = vld [vmem:[#allocation2 + $0x418] sm:$0xff]
    %v336 = vld [vmem:[#allocation2 + $0x420] sm:$0xff]
    %v337 = vld [vmem:[#allocation2 + $0x428] sm:$0xff]
    %v338 = vld [vmem:[#allocation2 + $0x430] sm:$0xff]
    %v339 = vld [vmem:[#allocation2 + $0x438] sm:$0xff]
    %v340 = vld [vmem:[#allocation2 + $0x440] sm:$0xff]
    %v341 = vld [vmem:[#allocation2 + $0x448] sm:$0xff]
    %v342 = vld [vmem:[#allocation2 + $0x450] sm:$0xff]
    %v343 = vld [vmem:[#allocation2 + $0x458] sm:$0xff]
    %v344 = vld [vmem:[#allocation2 + $0x460] sm:$0xff]
    %v345 = vld [vmem:[#allocation2 + $0x468] sm:$0xff]
    %v346 = vld [vmem:[#allocation2 + $0x470] sm:$0xff]
    %v347 = vld [vmem:[#allocation2 + $0x478] sm:$0xff]
    %v348 = vld [vmem:[#allocation2 + $0x480] sm:$0xff]
    %v349 = vld [vmem:[#allocation2 + $0x488] sm:$0xff]
    %v350 = vld [vmem:[#allocation2 + $0x490] sm:$0xff]
    %v351 = vld [vmem:[#allocation2 + $0x498] sm:$0xff]
    %v352 = vld [vmem:[#allocation2 + $0x4a0] sm:$0xff]
    %v353 = vld [vmem:[#allocation2 + $0x4a8] sm:$0xff]
    %v354 = vld [vmem:[#allocation2 + $0x4b0] sm:$0xff]
    %v355 = vld [vmem:[#allocation2 + $0x4b8] sm:$0xff]
    %v356 = vld [vmem:[#allocation2 + $0x4c0] sm:$0xff]
    %v357 = vld [vmem:[#allocation2 + $0x4c8] sm:$0xff]
    %v358 = vld [vmem:[#allocation2 + $0x4d0] sm:$0xff]
    %v359 = vld [vmem:[#allocation2 + $0x4d8] sm:$0xff]
    %v360 = vld [vmem:[%s4] sm:$0x7]
    %v362 = vperm.slane %v360, 0
    %v363 = vperm.slane %v360, 1
    %v364 = vperm.slane %v360, 2
    %vm368 = vcmask 261120
    %v370 = vsel %vm368, %v203, 0
    %372 = vmatpush.msra.mxu0 %v249
    %373 = vmatpush.msra.mxu0 %v246
    %374 = vmatpush.msra.mxu0 %v243
    %375 = vmatpush.msra.mxu0 %v240
    %376 = vmatpush.msra.mxu0 %v237
    %377 = vmatpush.msra.mxu0 %v234
    %378 = vmatpush.msra.mxu0 %v231
    %379 = vmatpush.msra.mxu0 %v228
    %380 = vmatpush.msra.mxu0 %v225
    %381 = vmatpush.msra.mxu0 %v222
    %382 = vmatpush.msra.mxu0 %v219
    %383 = vmatpush.msra.mxu0 %v216
    %384 = vmatpush.msra.mxu0 %v213
    %385 = vmatpush.msra.mxu0 %v210
    %386 = vmatpush.msra.mxu0 %v207
    %387 = vmatpush.msra.mxu0 %v204
    %388 = vmatmul.f32.gmra.mxu0 %v200
    %v389 = vpop.f32.mrf.mxu0
    %v390 = vadd.f32 %v362, %v389
    %391 = vdwg.mxu0
    %392 = vmatpush.msra.mxu0 %v297
    %393 = vmatpush.msra.mxu0 %v294
    %394 = vmatpush.msra.mxu0 %v291
    %395 = vmatpush.msra.mxu0 %v288
    %396 = vmatpush.msra.mxu0 %v285
    %397 = vmatpush.msra.mxu0 %v282
    %398 = vmatpush.msra.mxu0 %v279
    %399 = vmatpush.msra.mxu0 %v276
    %400 = vmatpush.msra.mxu0 %v273
    %401 = vmatpush.msra.mxu0 %v270
    %402 = vmatpush.msra.mxu0 %v267
    %403 = vmatpush.msra.mxu0 %v264
    %404 = vmatpush.msra.mxu0 %v261
    %405 = vmatpush.msra.mxu0 %v258
    %406 = vmatpush.msra.mxu0 %v255
    %407 = vmatpush.msra.mxu0 %v252
    %408 = vmatmul.f32.gmra.mxu0 %v201
    %v409 = vpop.f32.mrf.mxu0
    %v410 = vadd.f32 %v390, %v409
    %411 = vdwg.mxu0
    %412 = vmatpush.msra.mxu0 %v345
    %413 = vmatpush.msra.mxu0 %v342
    %414 = vmatpush.msra.mxu0 %v339
    %415 = vmatpush.msra.mxu0 %v336
    %416 = vmatpush.msra.mxu0 %v333
    %417 = vmatpush.msra.mxu0 %v330
    %418 = vmatpush.msra.mxu0 %v327
    %419 = vmatpush.msra.mxu0 %v324
    %420 = vmatpush.msra.mxu0 %v321
    %421 = vmatpush.msra.mxu0 %v318
    %422 = vmatpush.msra.mxu0 %v315
    %423 = vmatpush.msra.mxu0 %v312
    %424 = vmatpush.msra.mxu0 %v309
    %425 = vmatpush.msra.mxu0 %v306
    %426 = vmatpush.msra.mxu0 %v303
    %427 = vmatpush.msra.mxu0 %v300
    %428 = vmatmul.f32.gmra.mxu0 %v202
    %v429 = vpop.f32.mrf.mxu0
    %v430 = vadd.f32 %v410, %v429
    %431 = vdwg.mxu0
    %432 = vmatpush.msra.mxu0 0.0
    %433 = vmatpush.msra.mxu0 0.0
    %434 = vmatpush.msra.mxu0 0.0
    %435 = vmatpush.msra.mxu0 0.0
    %436 = vmatpush.msra.mxu0 0.0
    %437 = vmatpush.msra.mxu0 0.0
    %438 = vmatpush.msra.mxu0 0.0
    %439 = vmatpush.msra.mxu0 0.0
    %440 = vmatpush.msra.mxu0 0.0
    %441 = vmatpush.msra.mxu0 0.0
    %442 = vmatpush.msra.mxu0 0.0
    %443 = vmatpush.msra.mxu0 0.0
    %444 = vmatpush.msra.mxu0 %v357
    %445 = vmatpush.msra.mxu0 %v354
    %446 = vmatpush.msra.mxu0 %v351
    %447 = vmatpush.msra.mxu0 %v348
    %448 = vmatmul.f32.gmra.mxu0 %v370
    %v449 = vpop.f32.mrf.mxu0
    %v450 = vadd.f32 %v430, %v449
    %451 = vdwg.mxu0
    %452 = vmatpush.msra.mxu0 %v250
    %453 = vmatpush.msra.mxu0 %v247
    %454 = vmatpush.msra.mxu0 %v244
    %455 = vmatpush.msra.mxu0 %v241
    %456 = vmatpush.msra.mxu0 %v238
    %457 = vmatpush.msra.mxu0 %v235
    %458 = vmatpush.msra.mxu0 %v232
    %459 = vmatpush.msra.mxu0 %v229
    %460 = vmatpush.msra.mxu0 %v226
    %461 = vmatpush.msra.mxu0 %v223
    %462 = vmatpush.msra.mxu0 %v220
    %463 = vmatpush.msra.mxu0 %v217
    %464 = vmatpush.msra.mxu0 %v214
    %465 = vmatpush.msra.mxu0 %v211
    %466 = vmatpush.msra.mxu0 %v208
    %467 = vmatpush.msra.mxu0 %v205
    %468 = vmatmul.f32.gmra.mxu0 %v200
    %v469 = vpop.f32.mrf.mxu0
    %v470 = vadd.f32 %v363, %v469
    %471 = vdwg.mxu0
    %472 = vmatpush.msra.mxu0 %v298
    %473 = vmatpush.msra.mxu0 %v295
    %474 = vmatpush.msra.mxu0 %v292
    %475 = vmatpush.msra.mxu0 %v289
    %476 = vmatpush.msra.mxu0 %v286
    %477 = vmatpush.msra.mxu0 %v283
    %478 = vmatpush.msra.mxu0 %v280
    %479 = vmatpush.msra.mxu0 %v277
    %480 = vmatpush.msra.mxu0 %v274
    %481 = vmatpush.msra.mxu0 %v271
    %482 = vmatpush.msra.mxu0 %v268
    %483 = vmatpush.msra.mxu0 %v265
    %484 = vmatpush.msra.mxu0 %v262
    %485 = vmatpush.msra.mxu0 %v259
    %486 = vmatpush.msra.mxu0 %v256
    %487 = vmatpush.msra.mxu0 %v253
    %488 = vmatmul.f32.gmra.mxu0 %v201
    %v489 = vpop.f32.mrf.mxu0
    %v490 = vadd.f32 %v470, %v489
    %491 = vdwg.mxu0
    %492 = vmatpush.msra.mxu0 %v346
    %493 = vmatpush.msra.mxu0 %v343
    %494 = vmatpush.msra.mxu0 %v340
    %495 = vmatpush.msra.mxu0 %v337
    %496 = vmatpush.msra.mxu0 %v334
    %497 = vmatpush.msra.mxu0 %v331
    %498 = vmatpush.msra.mxu0 %v328
    %499 = vmatpush.msra.mxu0 %v325
    %500 = vmatpush.msra.mxu0 %v322
    %501 = vmatpush.msra.mxu0 %v319
    %502 = vmatpush.msra.mxu0 %v316
    %503 = vmatpush.msra.mxu0 %v313
    %504 = vmatpush.msra.mxu0 %v310
    %505 = vmatpush.msra.mxu0 %v307
    %506 = vmatpush.msra.mxu0 %v304
    %507 = vmatpush.msra.mxu0 %v301
    %508 = vmatmul.f32.gmra.mxu0 %v202
    %v509 = vpop.f32.mrf.mxu0
    %v510 = vadd.f32 %v490, %v509
    %511 = vdwg.mxu0
    %512 = vmatpush.msra.mxu0 0.0
    %513 = vmatpush.msra.mxu0 0.0
    %514 = vmatpush.msra.mxu0 0.0
    %515 = vmatpush.msra.mxu0 0.0
    %516 = vmatpush.msra.mxu0 0.0
    %517 = vmatpush.msra.mxu0 0.0
    %518 = vmatpush.msra.mxu0 0.0
    %519 = vmatpush.msra.mxu0 0.0
    %520 = vmatpush.msra.mxu0 0.0
    %521 = vmatpush.msra.mxu0 0.0
    %522 = vmatpush.msra.mxu0 0.0
    %523 = vmatpush.msra.mxu0 0.0
    %524 = vmatpush.msra.mxu0 %v358
    %525 = vmatpush.msra.mxu0 %v355
    %526 = vmatpush.msra.mxu0 %v352
    %527 = vmatpush.msra.mxu0 %v349
    %528 = vmatmul.f32.gmra.mxu0 %v370
    %v529 = vpop.f32.mrf.mxu0
    %v530 = vadd.f32 %v510, %v529
    %531 = vdwg.mxu0
    %532 = vmatpush.msra.mxu0 %v251
    %533 = vmatpush.msra.mxu0 %v248
    %534 = vmatpush.msra.mxu0 %v245
    %535 = vmatpush.msra.mxu0 %v242
    %536 = vmatpush.msra.mxu0 %v239
    %537 = vmatpush.msra.mxu0 %v236
    %538 = vmatpush.msra.mxu0 %v233
    %539 = vmatpush.msra.mxu0 %v230
    %540 = vmatpush.msra.mxu0 %v227
    %541 = vmatpush.msra.mxu0 %v224
    %542 = vmatpush.msra.mxu0 %v221
    %543 = vmatpush.msra.mxu0 %v218
    %544 = vmatpush.msra.mxu0 %v215
    %545 = vmatpush.msra.mxu0 %v212
    %546 = vmatpush.msra.mxu0 %v209
    %547 = vmatpush.msra.mxu0 %v206
    %548 = vmatmul.f32.gmra.mxu0 %v200
    %v549 = vpop.f32.mrf.mxu0
    %v550 = vadd.f32 %v364, %v549
    %551 = vdwg.mxu0
    %552 = vmatpush.msra.mxu0 %v299
    %553 = vmatpush.msra.mxu0 %v296
    %554 = vmatpush.msra.mxu0 %v293
    %555 = vmatpush.msra.mxu0 %v290
    %556 = vmatpush.msra.mxu0 %v287
    %557 = vmatpush.msra.mxu0 %v284
    %558 = vmatpush.msra.mxu0 %v281
    %559 = vmatpush.msra.mxu0 %v278
    %560 = vmatpush.msra.mxu0 %v275
    %561 = vmatpush.msra.mxu0 %v272
    %562 = vmatpush.msra.mxu0 %v269
    %563 = vmatpush.msra.mxu0 %v266
    %564 = vmatpush.msra.mxu0 %v263
    %565 = vmatpush.msra.mxu0 %v260
    %566 = vmatpush.msra.mxu0 %v257
    %567 = vmatpush.msra.mxu0 %v254
    %568 = vmatmul.f32.gmra.mxu0 %v201
    %v569 = vpop.f32.mrf.mxu0
    %v570 = vadd.f32 %v550, %v569
    %571 = vdwg.mxu0
    %572 = vmatpush.msra.mxu0 %v347
    %573 = vmatpush.msra.mxu0 %v344
    %574 = vmatpush.msra.mxu0 %v341
    %575 = vmatpush.msra.mxu0 %v338
    %576 = vmatpush.msra.mxu0 %v335
    %577 = vmatpush.msra.mxu0 %v332
    %578 = vmatpush.msra.mxu0 %v329
    %579 = vmatpush.msra.mxu0 %v326
    %580 = vmatpush.msra.mxu0 %v323
    %581 = vmatpush.msra.mxu0 %v320
    %582 = vmatpush.msra.mxu0 %v317
    %583 = vmatpush.msra.mxu0 %v314
    %584 = vmatpush.msra.mxu0 %v311
    %585 = vmatpush.msra.mxu0 %v308
    %586 = vmatpush.msra.mxu0 %v305
    %587 = vmatpush.msra.mxu0 %v302
    %588 = vmatmul.f32.gmra.mxu0 %v202
    %v589 = vpop.f32.mrf.mxu0
    %v590 = vadd.f32 %v570, %v589
    %591 = vdwg.mxu0
    %592 = vmatpush.msra.mxu0 0.0
    %593 = vmatpush.msra.mxu0 0.0
    %594 = vmatpush.msra.mxu0 0.0
    %595 = vmatpush.msra.mxu0 0.0
    %596 = vmatpush.msra.mxu0 0.0
    %597 = vmatpush.msra.mxu0 0.0
    %598 = vmatpush.msra.mxu0 0.0
    %599 = vmatpush.msra.mxu0 0.0
    %600 = vmatpush.msra.mxu0 0.0
    %601 = vmatpush.msra.mxu0 0.0
    %602 = vmatpush.msra.mxu0 0.0
    %603 = vmatpush.msra.mxu0 0.0
    %604 = vmatpush.msra.mxu0 %v359
    %605 = vmatpush.msra.mxu0 %v356
    %606 = vmatpush.msra.mxu0 %v353
    %607 = vmatpush.msra.mxu0 %v350
    %608 = vmatmul.f32.gmra.mxu0 %v370
    %v609 = vpop.f32.mrf.mxu0
    %v610 = vadd.f32 %v590, %v609
    %611 = vdwg.mxu0
    %v612 = vmax.f32 %v450, 0.0
    %v613 = vmax.f32 %v530, 0.0
    %v614 = vmax.f32 %v610, 0.0
    %618 = vrot.lane.b32.xlu0 %v612, 96
    %v619 = vpop.permute.xlu0 %618
    %620 = vrot.lane.b32.xlu0 %v613, 96
    %v621 = vpop.permute.xlu0 %620
    %622 = vrot.lane.b32.xlu0 %v614, 96
    %v623 = vpop.permute.xlu0 %622
    %v624 = vsel %vm192, %v619, %v621
    %v625 = vsel %vm192, %v621, %v623
    %v629 = vmax.f32 %v612, %v624
    %v630 = vmax.f32 %v613, %v625
    %v631 = vmax.f32 %v614, %v623
    %v632 = vld [vmem:[%s5] sm:$0xff]
    %v633 = vld [vmem:[%s5 + $0x8] sm:$0xff]
    %v634 = vld [vmem:[%s5 + $0x10] sm:$0xff]
    %v635 = vld [vmem:[%s5 + $0x18] sm:$0xff]
    %v636 = vld [vmem:[%s5 + $0x20] sm:$0xff]
    %v637 = vld [vmem:[%s5 + $0x28] sm:$0xff]
    %v638 = vld [vmem:[%s5 + $0x30] sm:$0xff]
    %v639 = vld [vmem:[%s5 + $0x38] sm:$0xff]
    %v640 = vld [vmem:[%s5 + $0x40] sm:$0xff]
    %v641 = vld [vmem:[%s5 + $0x48] sm:$0xff]
    %v642 = vld [vmem:[%s5 + $0x50] sm:$0xff]
    %v643 = vld [vmem:[%s5 + $0x58] sm:$0xff]
    %v644 = vld [vmem:[%s5 + $0x60] sm:$0xff]
    %v645 = vld [vmem:[%s5 + $0x68] sm:$0xff]
    %v646 = vld [vmem:[%s5 + $0x70] sm:$0xff]
    %v647 = vld [vmem:[%s5 + $0x78] sm:$0xff]
    %v648 = vld [vmem:[%s5 + $0x80] sm:$0xff]
    %v649 = vld [vmem:[%s5 + $0x88] sm:$0xff]
    %v650 = vld [vmem:[%s5 + $0x90] sm:$0xff]
    %v651 = vld [vmem:[%s5 + $0x98] sm:$0xff]
    %v652 = vld [vmem:[%s5 + $0xa0] sm:$0xff]
    %v653 = vld [vmem:[%s5 + $0xa8] sm:$0xff]
    %v654 = vld [vmem:[%s5 + $0xb0] sm:$0xff]
    %v655 = vld [vmem:[%s5 + $0xb8] sm:$0xff]
    %v656 = vld [vmem:[%s5 + $0xc0] sm:$0xff]
    %v657 = vld [vmem:[%s5 + $0xc8] sm:$0xff]
    %v658 = vld [vmem:[%s5 + $0xd0] sm:$0xff]
    %v659 = vld [vmem:[%s5 + $0xd8] sm:$0xff]
    %v660 = vld [vmem:[%s5 + $0xe0] sm:$0xff]
    %v661 = vld [vmem:[%s5 + $0xe8] sm:$0xff]
    %v662 = vld [vmem:[%s5 + $0xf0] sm:$0xff]
    %v663 = vld [vmem:[%s5 + $0xf8] sm:$0xff]
    %v664 = vld [vmem:[%s5 + $0x100] sm:$0xff]
    %v665 = vld [vmem:[%s5 + $0x108] sm:$0xff]
    %v666 = vld [vmem:[%s5 + $0x110] sm:$0xff]
    %v667 = vld [vmem:[%s5 + $0x118] sm:$0xff]
    %v668 = vld [vmem:[%s5 + $0x120] sm:$0xff]
    %v669 = vld [vmem:[%s5 + $0x128] sm:$0xff]
    %v670 = vld [vmem:[%s5 + $0x130] sm:$0xff]
    %v671 = vld [vmem:[%s5 + $0x138] sm:$0xff]
    %v672 = vld [vmem:[%s6] sm:$0x1]
    %v674 = vperm.slane %v672, 0
    %v677 = vsel %vm92, %v631, 0
    %679 = vmatpush.msra.mxu0 %v647
    %680 = vmatpush.msra.mxu0 %v646
    %681 = vmatpush.msra.mxu0 %v645
    %682 = vmatpush.msra.mxu0 %v644
    %683 = vmatpush.msra.mxu0 %v643
    %684 = vmatpush.msra.mxu0 %v642
    %685 = vmatpush.msra.mxu0 %v641
    %686 = vmatpush.msra.mxu0 %v640
    %687 = vmatpush.msra.mxu0 %v639
    %688 = vmatpush.msra.mxu0 %v638
    %689 = vmatpush.msra.mxu0 %v637
    %690 = vmatpush.msra.mxu0 %v636
    %691 = vmatpush.msra.mxu0 %v635
    %692 = vmatpush.msra.mxu0 %v634
    %693 = vmatpush.msra.mxu0 %v633
    %694 = vmatpush.msra.mxu0 %v632
    %695 = vmatmul.f32.gmra.mxu0 %v629
    %v696 = vpop.f32.mrf.mxu0
    %v697 = vadd.f32 %v674, %v696
    %698 = vdwg.mxu0
    %699 = vmatpush.msra.mxu0 %v663
    %700 = vmatpush.msra.mxu0 %v662
    %701 = vmatpush.msra.mxu0 %v661
    %702 = vmatpush.msra.mxu0 %v660
    %703 = vmatpush.msra.mxu0 %v659
    %704 = vmatpush.msra.mxu0 %v658
    %705 = vmatpush.msra.mxu0 %v657
    %706 = vmatpush.msra.mxu0 %v656
    %707 = vmatpush.msra.mxu0 %v655
    %708 = vmatpush.msra.mxu0 %v654
    %709 = vmatpush.msra.mxu0 %v653
    %710 = vmatpush.msra.mxu0 %v652
    %711 = vmatpush.msra.mxu0 %v651
    %712 = vmatpush.msra.mxu0 %v650
    %713 = vmatpush.msra.mxu0 %v649
    %714 = vmatpush.msra.mxu0 %v648
    %715 = vmatmul.f32.gmra.mxu0 %v630
    %v716 = vpop.f32.mrf.mxu0
    %v717 = vadd.f32 %v697, %v716
    %718 = vdwg.mxu0
    %719 = vmatpush.msra.mxu0 0.0
    %720 = vmatpush.msra.mxu0 0.0
    %721 = vmatpush.msra.mxu0 0.0
    %722 = vmatpush.msra.mxu0 0.0
    %723 = vmatpush.msra.mxu0 0.0
    %724 = vmatpush.msra.mxu0 0.0
    %725 = vmatpush.msra.mxu0 0.0
    %726 = vmatpush.msra.mxu0 0.0
    %727 = vmatpush.msra.mxu0 %v671
    %728 = vmatpush.msra.mxu0 %v670
    %729 = vmatpush.msra.mxu0 %v669
    %730 = vmatpush.msra.mxu0 %v668
    %731 = vmatpush.msra.mxu0 %v667
    %732 = vmatpush.msra.mxu0 %v666
    %733 = vmatpush.msra.mxu0 %v665
    %734 = vmatpush.msra.mxu0 %v664
    %735 = vmatmul.f32.gmra.mxu0 %v677
    %v736 = vpop.f32.mrf.mxu0
    %v737 = vadd.f32 %v717, %v736
    %738 = vdwg.mxu0
    %v739 = vmax.f32 %v737, 0.0
    %v740 = vld [vmem:[%s7] sm:$0xff]
    %v741 = vld [vmem:[%s7 + $0x8] sm:$0xff]
    %v742 = vld [vmem:[%s7 + $0x10] sm:$0xff]
    %v743 = vld [vmem:[%s7 + $0x18] sm:$0xff]
    %v744 = vld [vmem:[%s8] sm:$0x1]
    %v746 = vperm.slane %v744, 0
    %v749 = vsel %vm368, %v739, 0
    %751 = vmatpush.msra.mxu0 0.0
    %752 = vmatpush.msra.mxu0 0.0
    %753 = vmatpush.msra.mxu0 0.0
    %754 = vmatpush.msra.mxu0 0.0
    %755 = vmatpush.msra.mxu0 0.0
    %756 = vmatpush.msra.mxu0 0.0
    %757 = vmatpush.msra.mxu0 0.0
    %758 = vmatpush.msra.mxu0 0.0
    %759 = vmatpush.msra.mxu0 0.0
    %760 = vmatpush.msra.mxu0 0.0
    %761 = vmatpush.msra.mxu0 0.0
    %762 = vmatpush.msra.mxu0 0.0
    %763 = vmatpush.msra.mxu0 %v743
    %764 = vmatpush.msra.mxu0 %v742
    %765 = vmatpush.msra.mxu0 %v741
    %766 = vmatpush.msra.mxu0 %v740
    %767 = vmatmul.f32.gmra.mxu0 %v749
    %v768 = vpop.f32.mrf.mxu0
    %v769 = vadd.f32 %v746, %v768
    %770 = vdwg.mxu0
    %771 = vst [vmem:[#allocation5] sm:$0xff] %v769
    // Predicated region
    $region42: #{tpu_custom_call.1} parent=1 // pred_check
      _
    $region43: #{tpu_custom_call.1} parent=1 // pred_check_branch
      %773 = sbr.rel (0) target = $region45
    $region44: #{tpu_custom_call.1} parent=1 // pred_region
      %775 = vsyncadd [#allocation4], 0
      %s777 = sshll.u32 [#allocation5], 4
      %s778 = int_to_ptr.vmem [resolvable:$true] %s777
      %s779 = sshll.u32 %s9, 4
      %s780 = int_to_ptr.hbm [resolvable:$true] %s779
      %782 = dma.vmem_to_hbm [thread:$0]  %s778, 128, %s780, [#allocation4]
    $region45: #{tpu_custom_call.1} parent=1 // pred_fallthru
      _
    // Predicated region
    $region46: #{tpu_custom_call.1} parent=1 // pred_check
      _
    $region47: #{tpu_custom_call.1} parent=1 // pred_check_branch
      %784 = sbr.rel (0) target = $region49
    $region48: #{tpu_custom_call.1} parent=1 // pred_region
      %786 = dma.done [#allocation4], 128
    $region49: #{tpu_custom_call.1} parent=1 // pred_fallthru
      _
    %787 = vsyncpa [#allocation3], 1
    %788 = vsyncpa [#allocation4], 1

</llo_original>
